<compile_context>
chip_gen: v7x
topology: tpu7x:2x2x1
jax: 0.10.0
libtpu: 0.0.40
codegen_flags: <defaults>
</compile_context>

<pallas_src>
import jax
import jax.numpy as jnp
from jax import lax
from jax.experimental import pallas as pl
from jax.experimental.pallas import tpu as pltpu


def _pg_policy_kernel(obs_ref, w1_ref, b1_ref, w2_ref, b2_ref, u_ref, out_ref):
    # obs_ref: (Bt, In) bf16 — streamed natural layout (no wrapper transpose).
    x = obs_ref[...]

    # ---- Linear1 + ReLU:  h[hid, b] = sum_k w1[hid, k] * x[b, k] -----------
    # Contracting dim 1 of BOTH operands puts batch in the lane dimension
    # directly; the MXU handles the orientation (no explicit transpose).
    h = lax.dot_general(w1_ref[...], x,
                        dimension_numbers=(((1,), (1,)), ((), ())),
                        preferred_element_type=jnp.float32)            # (H, Bt)
    h = jnp.maximum(h + b1_ref[...], 0.0)
    # TODO(synk): on v7x, fold b1 into the matmul (ones row on x, bias col on
    # w1) once the VALU becomes the limiting slot.

    # ---- Linear2 ------------------------------------------------------------
    logits = jnp.dot(w2_ref[...], h,
                     preferred_element_type=jnp.float32) + b2_ref[...]  # (A, Bt)
    num_actions = logits.shape[0]

    # ---- softmax statistics (batch in lanes; reductions over tiny A axis) ---
    m = jnp.max(logits, axis=0, keepdims=True)                          # (1, Bt)
    e = jnp.exp(logits - m)                                             # (A, Bt)
    s = jnp.sum(e, axis=0, keepdims=True)                               # (1, Bt)

    # ---- Categorical sampling via inverse CDF --------------------------------
    #   cdf_j < u  <=>  cumsum(e)_j < u * s
    # so no normalization / reciprocal is needed, and the cumulative sum over
    # the tiny action axis is an unrolled running sum (no tri matmul).
    thresh = u_ref[...] * s                                             # (1, Bt)
    run = jnp.zeros(thresh.shape, jnp.float32)
    count = jnp.zeros(thresh.shape, jnp.int32)
    for j in range(num_actions):                                        # static unroll
        run = run + e[j:j + 1, :]
        count = count + (run < thresh).astype(jnp.int32)
    action = jnp.minimum(count, num_actions - 1)                        # (1, Bt) int32

    # ---- log_prob via log-sum-exp of logits at the sampled action ------------
    row = lax.broadcasted_iota(jnp.int32, logits.shape, 0)              # (A, Bt)
    onehot = (row == action).astype(jnp.float32)
    sel_logit = jnp.sum(onehot * logits, axis=0, keepdims=True)         # (1, Bt)
    logp = sel_logit - (m + jnp.log(s))                                 # (1, Bt)

    # ---- single lane-dense store: row 0 = log_prob, row 1 = action -----------
    out_ref[...] = jnp.concatenate([logp, action.astype(jnp.float32)], axis=0)


def _round_up(x, m):
    return ((x + m - 1) // m) * m


def pg_policy_forward(obs, w1, b1, w2, b2, u, *, b_tile=8192):
    """obs: (B, In) f32/bf16; w1: (H, In); b1: (H,); w2: (A, H); b2: (A,)
    (torch nn.Linear layout); u: (B,) uniform [0,1) randoms.
    Returns (action (B,) int32, log_prob (B,) f32)."""
    B, In = obs.shape
    H = w1.shape[0]
    A = w2.shape[0]

    # --- batch tile selection -------------------------------------------------
    # Big tiles amortize the ~0.35us fixed per-grid-step overhead; cap at the
    # (128-aligned) batch so tiny batches still run, and keep >= 2 grid steps
    # when the batch allows it so the "parallel" axis shards across v7x's two
    # TensorCores.
    bt = max(128, min(int(b_tile), _round_up(B, 128)))
    bt = _round_up(bt, 128)
    if B >= 256:
        bt = min(bt, _round_up(pl.cdiv(B, 2), 128))
    n_blocks = pl.cdiv(B, bt)
    b_pad = n_blocks * bt

    # Stream obs in bf16 (halves the dominant HBM stream; MXU is bf16-native,
    # accumulation stays f32).  No-op if obs already arrives in bf16 — for the
    # full benefit the producer of obs should emit bf16 directly.
    obs_s = obs.astype(jnp.bfloat16)
    u_row = u.reshape(1, B).astype(jnp.float32)
    if b_pad != B:
        # Only pay a pad pass when the batch is not tile-aligned (tiny batches
        # or ragged tails); tile-aligned batches stream straight from the
        # caller's buffer with no extra HBM pass.
        obs_s = jnp.pad(obs_s, ((0, b_pad - B), (0, 0)))
        u_row = jnp.pad(u_row, ((0, 0), (0, b_pad - B)))

    # Residents (loaded once, stay in VMEM across grid steps).
    w1c = w1.astype(jnp.bfloat16)
    b1c = b1.reshape(H, 1).astype(jnp.float32)
    w2c = w2.astype(jnp.float32)
    b2c = b2.reshape(A, 1).astype(jnp.float32)

    resident = lambda shape: pl.BlockSpec(shape, lambda i: (0, 0))

    out = pl.pallas_call(
        _pg_policy_kernel,
        out_shape=jax.ShapeDtypeStruct((2, b_pad), jnp.float32),
        grid=(n_blocks,),
        in_specs=[
            pl.BlockSpec((bt, In), lambda i: (i, 0)),   # obs, streamed
            resident((H, In)),                          # w1 (bf16, resident)
            resident((H, 1)),                           # b1
            resident((A, H)),                           # w2
            resident((A, 1)),                           # b2
            pl.BlockSpec((1, bt), lambda i: (0, i)),    # u, streamed
        ],
        out_specs=pl.BlockSpec((2, bt), lambda i: (0, i)),  # [logp; action] slab
        compiler_params=pltpu.CompilerParams(
            dimension_semantics=("parallel",),
            vmem_limit_bytes=32 * 1024 * 1024),         # headroom for big tiles on v5e
    )(obs_s, w1c, b1c, w2c, b2c, u_row)

    log_prob = out[0, :B]
    action = out[1, :B].astype(jnp.int32)
    return action, log_prob


if __name__ == "__main__":
    # Small shapes consistent with the module's forward.
    B, INPUT_SIZE, HIDDEN_DIM, OUTPUT_SIZE = 2, 16, 32, 4

    key = jax.random.PRNGKey(0)
    k_obs, k_w1, k_b1, k_w2, k_b2, k_u = jax.random.split(key, 6)

    obs = jax.random.normal(k_obs, (B, INPUT_SIZE), dtype=jnp.float32)

    # torch nn.Linear layout: weight (out, in), bias (out,).
    w1 = jax.random.normal(k_w1, (HIDDEN_DIM, INPUT_SIZE), jnp.float32) * 0.1
    b1 = jax.random.normal(k_b1, (HIDDEN_DIM,), jnp.float32) * 0.1
    w2 = jax.random.normal(k_w2, (OUTPUT_SIZE, HIDDEN_DIM), jnp.float32) * 0.1
    b2 = jax.random.normal(k_b2, (OUTPUT_SIZE,), jnp.float32) * 0.1

    # Uniform sample driving Categorical inverse-CDF sampling.
    u = jax.random.uniform(k_u, (B,), dtype=jnp.float32)

    action, log_prob = pg_policy_forward(obs, w1, b1, w2, b2, u)
    jax.block_until_ready((action, log_prob))

    # Pure-JAX reference (uses the same bf16 quantization of the streamed
    # operands so the comparison is apples-to-apples).
    obs_q = obs.astype(jnp.bfloat16).astype(jnp.float32)
    w1_q = w1.astype(jnp.bfloat16).astype(jnp.float32)
    h_ref = jnp.maximum(obs_q @ w1_q.T + b1, 0.0)
    logits_ref = h_ref @ w2.T + b2
    probs_ref = jax.nn.softmax(logits_ref, axis=-1)
    cdf_ref = jnp.cumsum(probs_ref, axis=-1)
    idx = jnp.arange(B)

    # Sampled action must bracket u in the reference CDF (tolerate boundary
    # rounding from the different accumulation order).
    eps = 1e-4
    upper = cdf_ref[idx, action]
    lower = jnp.where(action > 0, cdf_ref[idx, jnp.maximum(action - 1, 0)], 0.0)
    assert bool(jnp.all((lower <= u + eps) & (u <= upper + eps))), \
        (action, u, cdf_ref)

    # log_prob must match log softmax at the sampled action.
    logp_ref = jax.nn.log_softmax(logits_ref, axis=-1)[idx, action]
    assert bool(jnp.allclose(log_prob, logp_ref, atol=1e-4)), (log_prob, logp_ref)

    print("KERNEL_OK")
</pallas_src>

<mosaic_0001>
module attributes {stable_mosaic.version = 11 : i64} {
  func.func @_pg_policy_kernel(%arg0: i32, %arg1: memref<128x16xbf16, #tpu.memory_space<vmem>>, %arg2: memref<32x16xbf16, #tpu.memory_space<vmem>>, %arg3: memref<32x1xf32, #tpu.memory_space<vmem>>, %arg4: memref<4x32xf32, #tpu.memory_space<vmem>>, %arg5: memref<4x1xf32, #tpu.memory_space<vmem>>, %arg6: memref<1x128xf32, #tpu.memory_space<vmem>>, %arg7: memref<2x128xf32, #tpu.memory_space<vmem>>) attributes {dimension_semantics = [#tpu.dimension_semantics<parallel>], iteration_bounds = array<i64: 1>, scalar_prefetch = 0 : i64, scratch_operands = 0 : i64, tpu.core_type = #tpu.core_type<tc>, window_params = [{transform_indices = @transform_0, window_bounds = array<i64: 128, 16>}, {pipeline_mode = #tpu.pipeline_mode<synchronous>, transform_indices = @transform_1, window_bounds = array<i64: 32, 16>}, {pipeline_mode = #tpu.pipeline_mode<synchronous>, transform_indices = @transform_2, window_bounds = array<i64: 32, 1>}, {pipeline_mode = #tpu.pipeline_mode<synchronous>, transform_indices = @transform_3, window_bounds = array<i64: 4, 32>}, {pipeline_mode = #tpu.pipeline_mode<synchronous>, transform_indices = @transform_4, window_bounds = array<i64: 4, 1>}, {transform_indices = @transform_5, window_bounds = array<i64: 1, 128>}, {transform_indices = @transform_6, window_bounds = array<i64: 2, 128>}]} {
    %c0 = arith.constant 0 : index
    %c0_0 = arith.constant 0 : index
    %0 = vector.load %arg1[%c0, %c0_0] : memref<128x16xbf16, #tpu.memory_space<vmem>>, vector<128x16xbf16>
    %c0_1 = arith.constant 0 : index
    %c0_2 = arith.constant 0 : index
    %1 = vector.load %arg2[%c0_1, %c0_2] : memref<32x16xbf16, #tpu.memory_space<vmem>>, vector<32x16xbf16>
    %cst = arith.constant dense<0.000000e+00> : vector<32x128xf32>
    %2 = tpu.matmul %1, %0, %cst {dimension_numbers = #tpu.dot_dimension_numbers<[1], [1], [0], [0], [0, 0, 1, 0], [], []>} : vector<32x16xbf16>, vector<128x16xbf16>, vector<32x128xf32> -> vector<32x128xf32>
    %c0_3 = arith.constant 0 : index
    %c0_4 = arith.constant 0 : index
    %3 = vector.load %arg3[%c0_3, %c0_4] : memref<32x1xf32, #tpu.memory_space<vmem>>, vector<32x1xf32>
    %4 = vector.broadcast %3 : vector<32x1xf32> to vector<32x128xf32>
    %5 = arith.addf %2, %4 : vector<32x128xf32>
    %cst_5 = arith.constant 0.000000e+00 : f32
    %6 = vector.broadcast %cst_5 : f32 to vector<32x128xf32>
    %7 = arith.maximumf %5, %6 : vector<32x128xf32>
    %c0_6 = arith.constant 0 : index
    %c0_7 = arith.constant 0 : index
    %8 = vector.load %arg4[%c0_6, %c0_7] : memref<4x32xf32, #tpu.memory_space<vmem>>, vector<4x32xf32>
    %cst_8 = arith.constant dense<0.000000e+00> : vector<4x128xf32>
    %9 = tpu.matmul %8, %7, %cst_8 {dimension_numbers = #tpu.dot_dimension_numbers<[1], [0], [0], [1], [0, 0, 1, 1], [], []>} : vector<4x32xf32>, vector<32x128xf32>, vector<4x128xf32> -> vector<4x128xf32>
    %c0_9 = arith.constant 0 : index
    %c0_10 = arith.constant 0 : index
    %10 = vector.load %arg5[%c0_9, %c0_10] : memref<4x1xf32, #tpu.memory_space<vmem>>, vector<4x1xf32>
    %11 = vector.broadcast %10 : vector<4x1xf32> to vector<4x128xf32>
    %12 = arith.addf %9, %11 : vector<4x128xf32>
    %cst_11 = arith.constant dense<0xFF800000> : vector<128xf32>
    %13 = vector.multi_reduction <maximumf>, %12, %cst_11 [0] : vector<4x128xf32> to vector<128xf32>
    %14 = vector.shape_cast %13 : vector<128xf32> to vector<1x128xf32>
    %15 = vector.broadcast %14 : vector<1x128xf32> to vector<4x128xf32>
    %16 = arith.subf %12, %15 : vector<4x128xf32>
    %17 = math.exp %16 : vector<4x128xf32>
    %cst_12 = arith.constant dense<0.000000e+00> : vector<128xf32>
    %18 = vector.multi_reduction <add>, %17, %cst_12 [0] : vector<4x128xf32> to vector<128xf32>
    %19 = vector.shape_cast %18 : vector<128xf32> to vector<1x128xf32>
    %c0_13 = arith.constant 0 : index
    %c0_14 = arith.constant 0 : index
    %20 = vector.load %arg6[%c0_13, %c0_14] : memref<1x128xf32, #tpu.memory_space<vmem>>, vector<1x128xf32>
    %21 = arith.mulf %20, %19 : vector<1x128xf32>
    %cst_15 = arith.constant 0.000000e+00 : f32
    %22 = vector.broadcast %cst_15 : f32 to vector<1x128xf32>
    %c0_i32 = arith.constant 0 : i32
    %23 = vector.broadcast %c0_i32 : i32 to vector<1x128xi32>
    %24 = vector.extract_strided_slice %17 {offsets = [0, 0], sizes = [1, 128], strides = [1, 1]} : vector<4x128xf32> to vector<1x128xf32>
    %25 = arith.addf %22, %24 : vector<1x128xf32>
    %26 = arith.cmpf olt, %25, %21 : vector<1x128xf32>
    %27 = arith.extui %26 : vector<1x128xi1> to vector<1x128xi32>
    %28 = arith.addi %23, %27 : vector<1x128xi32>
    %29 = vector.extract_strided_slice %17 {offsets = [1, 0], sizes = [1, 128], strides = [1, 1]} : vector<4x128xf32> to vector<1x128xf32>
    %30 = arith.addf %25, %29 : vector<1x128xf32>
    %31 = arith.cmpf olt, %30, %21 : vector<1x128xf32>
    %32 = arith.extui %31 : vector<1x128xi1> to vector<1x128xi32>
    %33 = arith.addi %28, %32 : vector<1x128xi32>
    %34 = vector.extract_strided_slice %17 {offsets = [2, 0], sizes = [1, 128], strides = [1, 1]} : vector<4x128xf32> to vector<1x128xf32>
    %35 = arith.addf %30, %34 : vector<1x128xf32>
    %36 = arith.cmpf olt, %35, %21 : vector<1x128xf32>
    %37 = arith.extui %36 : vector<1x128xi1> to vector<1x128xi32>
    %38 = arith.addi %33, %37 : vector<1x128xi32>
    %39 = vector.extract_strided_slice %17 {offsets = [3, 0], sizes = [1, 128], strides = [1, 1]} : vector<4x128xf32> to vector<1x128xf32>
    %40 = arith.addf %35, %39 : vector<1x128xf32>
    %41 = arith.cmpf olt, %40, %21 : vector<1x128xf32>
    %42 = arith.extui %41 : vector<1x128xi1> to vector<1x128xi32>
    %43 = arith.addi %38, %42 : vector<1x128xi32>
    %c3_i32 = arith.constant 3 : i32
    %44 = vector.broadcast %c3_i32 : i32 to vector<1x128xi32>
    %45 = arith.minsi %43, %44 : vector<1x128xi32>
    %46 = tpu.iota {dimensions = array<i32: 0>} : vector<4x128xi32>
    %47 = vector.broadcast %45 : vector<1x128xi32> to vector<4x128xi32>
    %48 = arith.cmpi eq, %46, %47 : vector<4x128xi32>
    %49 = arith.extui %48 : vector<4x128xi1> to vector<4x128xi32>
    %50 = arith.sitofp %49 : vector<4x128xi32> to vector<4x128xf32>
    %51 = arith.mulf %50, %12 : vector<4x128xf32>
    %cst_16 = arith.constant dense<0.000000e+00> : vector<128xf32>
    %52 = vector.multi_reduction <add>, %51, %cst_16 [0] : vector<4x128xf32> to vector<128xf32>
    %53 = vector.shape_cast %52 : vector<128xf32> to vector<1x128xf32>
    %54 = math.log %19 : vector<1x128xf32>
    %55 = arith.addf %14, %54 : vector<1x128xf32>
    %56 = arith.subf %53, %55 : vector<1x128xf32>
    %57 = arith.sitofp %45 : vector<1x128xi32> to vector<1x128xf32>
    %58 = tpu.concatenate %56, %57 in 0 : vector<1x128xf32>, vector<1x128xf32> -> vector<2x128xf32>
    %c0_17 = arith.constant 0 : index
    %c0_18 = arith.constant 0 : index
    %59 = vector.load %arg7[%c0_17, %c0_18] : memref<2x128xf32, #tpu.memory_space<vmem>>, vector<2x128xf32>
    tpu.vector_store %arg7[%c0_17, %c0_18], %58 {strides = array<i32>} : memref<2x128xf32, #tpu.memory_space<vmem>>, vector<2x128xf32>,
    return
  }
  func.func @transform_0(%arg0: i32) -> (i32, i32) {
    %c0_i32 = arith.constant 0 : i32
    %c0_i32_0 = arith.constant 0 : i32
    return %arg0, %c0_i32 : i32, i32
  }
  func.func @transform_1(%arg0: i32) -> (i32, i32) {
    %c0_i32 = arith.constant 0 : i32
    %c0_i32_0 = arith.constant 0 : i32
    %c0_i32_1 = arith.constant 0 : i32
    return %c0_i32, %c0_i32_0 : i32, i32
  }
  func.func @transform_2(%arg0: i32) -> (i32, i32) {
    %c0_i32 = arith.constant 0 : i32
    %c0_i32_0 = arith.constant 0 : i32
    %c0_i32_1 = arith.constant 0 : i32
    return %c0_i32, %c0_i32_0 : i32, i32
  }
  func.func @transform_3(%arg0: i32) -> (i32, i32) {
    %c0_i32 = arith.constant 0 : i32
    %c0_i32_0 = arith.constant 0 : i32
    %c0_i32_1 = arith.constant 0 : i32
    return %c0_i32, %c0_i32_0 : i32, i32
  }
  func.func @transform_4(%arg0: i32) -> (i32, i32) {
    %c0_i32 = arith.constant 0 : i32
    %c0_i32_0 = arith.constant 0 : i32
    %c0_i32_1 = arith.constant 0 : i32
    return %c0_i32, %c0_i32_0 : i32, i32
  }
  func.func @transform_5(%arg0: i32) -> (i32, i32) {
    %c0_i32 = arith.constant 0 : i32
    %c0_i32_0 = arith.constant 0 : i32
    return %c0_i32, %arg0 : i32, i32
  }
  func.func @transform_6(%arg0: i32) -> (i32, i32) {
    %c0_i32 = arith.constant 0 : i32
    %c0_i32_0 = arith.constant 0 : i32
    return %c0_i32, %arg0 : i32, i32
  }
}

</mosaic_0001>

<llo_original>
// kernel: tpu_custom_call.1
$region0: #{tpu_custom_call.1}
  #allocation0 [shape = 'u32[]', space=smem, size = 0x4, offset = 0x4, fixed_abs, tag = 'smem constant byte address 0x4 - core index']
  #allocation1 [shape = 'u32[144,128]{1,0:T(1,128)}', space=vmem, size = 0x12000, scoped, tag = 'internal scratch']
  %s0 = inlined_call_operand.vmem [shape: bf16[128,16], index: 0, kind: input, shape index: {}]
  %s1 = inlined_call_operand.vmem [shape: bf16[32,16], index: 1, kind: input, shape index: {}]
  %s2 = inlined_call_operand.vmem [shape: f32[32,1], index: 2, kind: input, shape index: {}]
  %s3 = inlined_call_operand.vmem [shape: f32[4,32], index: 3, kind: input, shape index: {}]
  %s4 = inlined_call_operand.vmem [shape: f32[4,1], index: 4, kind: input, shape index: {}]
  %s5 = inlined_call_operand.vmem [shape: f32[1,128], index: 5, kind: input, shape index: {}]
  %s6 = inlined_call_operand.hbm [shape: f32[2,128], index: 6, kind: output, shape index: {}]
  %s7 = sld [smem:[#allocation0]]
  $region34: #{tpu_custom_call.1} parent=0
    _
  %s9 = ssub.s32 1, %s7
  %s10 = scalar_select 0, %s9, %s7
  $region1: #{tpu_custom_call.1} parent=0
    #allocation2 [shape = 'u8[1024]{0}', space=vmem, size = 0x400, scoped, tag = 'output window, operand 0, single buffered']
    #allocation3 [shape = 's32[1]{0}', space=sflag, size = 0x4, scoped, tag = 'scoped memory for tpu_custom_call.1']
    %11 = vsyncpa [#allocation3], 0
    // Predicated region
    $region2: #{tpu_custom_call.1} parent=1 // pred_check
      _
    $region3: #{tpu_custom_call.1} parent=1 // pred_check_branch
      %13 = sbr.rel (0) target = $region5
    $region4: #{tpu_custom_call.1} parent=1 // pred_region
      _
    $region5: #{tpu_custom_call.1} parent=1 // pred_fallthru
      _
    // Predicated region
    $region6: #{tpu_custom_call.1} parent=1 // pred_check
      _
    $region7: #{tpu_custom_call.1} parent=1 // pred_check_branch
      %15 = sbr.rel (0) target = $region9
    $region8: #{tpu_custom_call.1} parent=1 // pred_region
      _
    $region9: #{tpu_custom_call.1} parent=1 // pred_fallthru
      _
    // Predicated region
    $region10: #{tpu_custom_call.1} parent=1 // pred_check
      _
    $region11: #{tpu_custom_call.1} parent=1 // pred_check_branch
      %17 = sbr.rel (0) target = $region13
    $region12: #{tpu_custom_call.1} parent=1 // pred_region
      _
    $region13: #{tpu_custom_call.1} parent=1 // pred_fallthru
      _
    // Predicated region
    $region14: #{tpu_custom_call.1} parent=1 // pred_check
      _
    $region15: #{tpu_custom_call.1} parent=1 // pred_check_branch
      %19 = sbr.rel (0) target = $region17
    $region16: #{tpu_custom_call.1} parent=1 // pred_region
      _
    $region17: #{tpu_custom_call.1} parent=1 // pred_fallthru
      _
    // Predicated region
    $region18: #{tpu_custom_call.1} parent=1 // pred_check
      _
    $region19: #{tpu_custom_call.1} parent=1 // pred_check_branch
      %21 = sbr.rel (0) target = $region21
    $region20: #{tpu_custom_call.1} parent=1 // pred_region
      _
    $region21: #{tpu_custom_call.1} parent=1 // pred_fallthru
      _
    // Predicated region
    $region22: #{tpu_custom_call.1} parent=1 // pred_check
      _
    $region23: #{tpu_custom_call.1} parent=1 // pred_check_branch
      %23 = sbr.rel (0) target = $region25
    $region24: #{tpu_custom_call.1} parent=1 // pred_region
      _
    $region25: #{tpu_custom_call.1} parent=1 // pred_fallthru
      _
    %v25 = vld [vmem:[%s0] sm:$0xf]
    %v26 = vld [vmem:[%s0 + $0x4] sm:$0xf]
    %v27 = vld [vmem:[%s0 + $0x8] sm:$0xf]
    %v28 = vld [vmem:[%s0 + $0xc] sm:$0xf]
    %v29 = vld [vmem:[%s0 + $0x10] sm:$0xf]
    %v30 = vld [vmem:[%s0 + $0x14] sm:$0xf]
    %v31 = vld [vmem:[%s0 + $0x18] sm:$0xf]
    %v32 = vld [vmem:[%s0 + $0x1c] sm:$0xf]
    %v33 = vld [vmem:[%s0 + $0x20] sm:$0xf]
    %v34 = vld [vmem:[%s0 + $0x24] sm:$0xf]
    %v35 = vld [vmem:[%s0 + $0x28] sm:$0xf]
    %v36 = vld [vmem:[%s0 + $0x2c] sm:$0xf]
    %v37 = vld [vmem:[%s0 + $0x30] sm:$0xf]
    %v38 = vld [vmem:[%s0 + $0x34] sm:$0xf]
    %v39 = vld [vmem:[%s0 + $0x38] sm:$0xf]
    %v40 = vld [vmem:[%s0 + $0x3c] sm:$0xf]
    %v41 = vld [vmem:[%s1] sm:$0xf]
    %v42 = vld [vmem:[%s1 + $0x4] sm:$0xf]
    %v43 = vld [vmem:[%s1 + $0x8] sm:$0xf]
    %v44 = vld [vmem:[%s1 + $0xc] sm:$0xf]
    %v45 = vld [vmem:[%s2] sm:$0xff]
    %v46 = vld [vmem:[%s2 + $0x8] sm:$0xff]
    %v47 = vld [vmem:[%s2 + $0x10] sm:$0xff]
    %v48 = vld [vmem:[%s2 + $0x18] sm:$0xff]
    %50 = vset.pattern.permute.xlu0 0
    %51 = vperm.xlu0 %50, %v45
    %v52 = vpop.permute.xlu0 %51
    %55 = vset.pattern.permute.xlu0 0
    %56 = vperm.xlu0 %55, %v46
    %v57 = vpop.permute.xlu0 %56
    %60 = vset.pattern.permute.xlu0 0
    %61 = vperm.xlu0 %60, %v47
    %v62 = vpop.permute.xlu0 %61
    %65 = vset.pattern.permute.xlu0 0
    %66 = vperm.xlu0 %65, %v48
    %v67 = vpop.permute.xlu0 %66
    %v73 = vunpack.c.l.b16 %v41
    %v74 = vunpack.c.l.b16 %v42
    %v75 = vunpack.c.l.b16 %v43
    %v76 = vunpack.c.l.b16 %v44
    %v77 = vpack.c.b16 %v74, %v73
    %v78 = vpack.c.b16 %v76, %v75
    %v95 = vunpack.c.l.b16 %v25
    %v96 = vunpack.c.l.b16 %v26
    %v97 = vunpack.c.l.b16 %v27
    %v98 = vunpack.c.l.b16 %v28
    %v99 = vunpack.c.l.b16 %v29
    %v100 = vunpack.c.l.b16 %v30
    %v101 = vunpack.c.l.b16 %v31
    %v102 = vunpack.c.l.b16 %v32
    %v103 = vunpack.c.l.b16 %v33
    %v104 = vunpack.c.l.b16 %v34
    %v105 = vunpack.c.l.b16 %v35
    %v106 = vunpack.c.l.b16 %v36
    %v107 = vunpack.c.l.b16 %v37
    %v108 = vunpack.c.l.b16 %v38
    %v109 = vunpack.c.l.b16 %v39
    %v110 = vunpack.c.l.b16 %v40
    %v111 = vpack.c.b16 %v96, %v95
    %v112 = vpack.c.b16 %v98, %v97
    %v113 = vpack.c.b16 %v100, %v99
    %v114 = vpack.c.b16 %v102, %v101
    %v115 = vpack.c.b16 %v104, %v103
    %v116 = vpack.c.b16 %v106, %v105
    %v117 = vpack.c.b16 %v108, %v107
    %v118 = vpack.c.b16 %v110, %v109
    %vm119 = vcmask 130048
    %v121 = vsel %vm119, %v77, 0
    %v124 = vsel %vm119, %v78, 0
    %v127 = vsel %vm119, %v111, 0
    %v130 = vsel %vm119, %v112, 0
    %v133 = vsel %vm119, %v113, 0
    %v136 = vsel %vm119, %v114, 0
    %v139 = vsel %vm119, %v115, 0
    %v142 = vsel %vm119, %v116, 0
    %v145 = vsel %vm119, %v117, 0
    %v148 = vsel %vm119, %v118, 0
    %150 = vmatprep.subr.bf16.mxu0 0
    %151 = vmatpush1.bf16.xpose.msra.mxu0 %v127
    %152 = vmatprep.subr.bf16.mxu0 0
    %153 = vmatpush1.bf16.xpose.msra.mxu0 %v130
    %154 = vmatprep.subr.bf16.mxu0 0
    %155 = vmatpush1.bf16.xpose.msra.mxu0 %v133
    %156 = vmatprep.subr.bf16.mxu0 0
    %157 = vmatpush1.bf16.xpose.msra.mxu0 %v136
    %158 = vmatprep.subr.bf16.mxu0 0
    %159 = vmatpush1.bf16.xpose.msra.mxu0 %v139
    %160 = vmatprep.subr.bf16.mxu0 0
    %161 = vmatpush1.bf16.xpose.msra.mxu0 %v142
    %162 = vmatprep.subr.bf16.mxu0 0
    %163 = vmatpush1.bf16.xpose.msra.mxu0 %v145
    %164 = vmatprep.subr.bf16.mxu0 0
    %165 = vmatpush1.bf16.xpose.msra.mxu0 %v148
    %166 = vmatprep.subr.bf16.mxu0 0
    %167 = vmatpush1.bf16.xpose.msra.mxu0 0
    %168 = vmatprep.subr.bf16.mxu0 0
    %169 = vmatpush1.bf16.xpose.msra.mxu0 0
    %170 = vmatprep.subr.bf16.mxu0 0
    %171 = vmatpush1.bf16.xpose.msra.mxu0 0
    %172 = vmatprep.subr.bf16.mxu0 0
    %173 = vmatpush1.bf16.xpose.msra.mxu0 0
    %174 = vmatprep.subr.bf16.mxu0 0
    %175 = vmatpush1.bf16.xpose.msra.mxu0 0
    %176 = vmatprep.subr.bf16.mxu0 0
    %177 = vmatpush1.bf16.xpose.msra.mxu0 0
    %178 = vmatprep.subr.bf16.mxu0 0
    %179 = vmatpush1.bf16.xpose.msra.mxu0 0
    %180 = vmatprep.subr.bf16.mxu0 0
    %181 = vmatpush1.bf16.xpose.msra.mxu0 0
    %182 = vmatprep.mubr.bf16.mxu0 0
    %183 = vmatmul.mubr.bf16.gmra.mrb[0].mxu0 %v121
    %v184 = vpop.f32.mrb[0].mxu0
    %v185 = vadd.f32 %v52, %v184
    %v186 = vpop.f32.mrb[0].mxu0
    %v187 = vpop.f32.mrb[0].mxu0
    %v188 = vadd.f32 %v57, %v187
    %v189 = vpop.f32.mrb[0].mxu0
    %190 = vmatprep.mubr.bf16.mxu0 0
    %191 = vmatmul.mubr.bf16.gmra.mrb[0].mxu0 %v124
    %v192 = vpop.f32.mrb[0].mxu0
    %v193 = vadd.f32 %v62, %v192
    %v194 = vpop.f32.mrb[0].mxu0
    %v195 = vpop.f32.mrb[0].mxu0
    %v196 = vadd.f32 %v67, %v195
    %v197 = vpop.f32.mrb[0].mxu0
    %198 = vdwg.mxu0
    %v199 = vmax.f32 %v185, 0.0
    %v200 = vmax.f32 %v188, 0.0
    %v201 = vmax.f32 %v193, 0.0
    %v202 = vmax.f32 %v196, 0.0
    %v203 = vld [vmem:[%s3] sm:$0xf]
    %v204 = vld [vmem:[%s4] sm:$0xf]
    %206 = vset.pattern.permute.xlu0 0
    %207 = vperm.xlu0 %206, %v204
    %v208 = vpop.permute.xlu0 %207
    %vm210 = vcmask 261120
    %v212 = vsel %vm210, %v203, 0
    %214 = vmatprep.subr.mxu0 0.0
    %215 = vmatpush1.msra.mxu0 %v199
    %216 = vmatprep.subr.mxu0 0.0
    %217 = vmatpush1.msra.mxu0 %v200
    %218 = vmatprep.subr.mxu0 0.0
    %219 = vmatpush1.msra.mxu0 %v201
    %220 = vmatprep.subr.mxu0 0.0
    %221 = vmatpush1.msra.mxu0 %v202
    %222 = vmatprep.subr.mxu0 0.0
    %223 = vmatpush1.msra.mxu0 0.0
    %224 = vmatprep.subr.mxu0 0.0
    %225 = vmatpush1.msra.mxu0 0.0
    %226 = vmatprep.subr.mxu0 0.0
    %227 = vmatpush1.msra.mxu0 0.0
    %228 = vmatprep.subr.mxu0 0.0
    %229 = vmatpush1.msra.mxu0 0.0
    %230 = vmatprep.subr.mxu0 0.0
    %231 = vmatpush1.msra.mxu0 0.0
    %232 = vmatprep.subr.mxu0 0.0
    %233 = vmatpush1.msra.mxu0 0.0
    %234 = vmatprep.subr.mxu0 0.0
    %235 = vmatpush1.msra.mxu0 0.0
    %236 = vmatprep.subr.mxu0 0.0
    %237 = vmatpush1.msra.mxu0 0.0
    %238 = vmatprep.subr.mxu0 0.0
    %239 = vmatpush1.msra.mxu0 0.0
    %240 = vmatprep.subr.mxu0 0.0
    %241 = vmatpush1.msra.mxu0 0.0
    %242 = vmatprep.subr.mxu0 0.0
    %243 = vmatpush1.msra.mxu0 0.0
    %244 = vmatprep.subr.mxu0 0.0
    %245 = vmatpush1.msra.mxu0 0.0
    %246 = vmatprep.subr.mxu0 0.0
    %247 = vmatpush1.msra.mxu0 0.0
    %248 = vmatprep.subr.mxu0 0.0
    %249 = vmatpush1.msra.mxu0 0.0
    %250 = vmatprep.subr.mxu0 0.0
    %251 = vmatpush1.msra.mxu0 0.0
    %252 = vmatprep.subr.mxu0 0.0
    %253 = vmatpush1.msra.mxu0 0.0
    %254 = vmatprep.subr.mxu0 0.0
    %255 = vmatpush1.msra.mxu0 0.0
    %256 = vmatprep.subr.mxu0 0.0
    %257 = vmatpush1.msra.mxu0 0.0
    %258 = vmatprep.subr.mxu0 0.0
    %259 = vmatpush1.msra.mxu0 0.0
    %260 = vmatprep.subr.mxu0 0.0
    %261 = vmatpush1.msra.mxu0 0.0
    %262 = vmatprep.subr.mxu0 0.0
    %263 = vmatpush1.msra.mxu0 0.0
    %264 = vmatprep.subr.mxu0 0.0
    %265 = vmatpush1.msra.mxu0 0.0
    %266 = vmatprep.subr.mxu0 0.0
    %267 = vmatpush1.msra.mxu0 0.0
    %268 = vmatprep.subr.mxu0 0.0
    %269 = vmatpush1.msra.mxu0 0.0
    %270 = vmatprep.subr.mxu0 0.0
    %271 = vmatpush1.msra.mxu0 0.0
    %272 = vmatprep.subr.mxu0 0.0
    %273 = vmatpush1.msra.mxu0 0.0
    %274 = vmatprep.subr.mxu0 0.0
    %275 = vmatpush1.msra.mxu0 0.0
    %276 = vmatprep.subr.mxu0 0.0
    %277 = vmatpush1.msra.mxu0 0.0
    %278 = vmatprep.mubr.f32.mxu0 0.0
    %279 = vmatmul.mubr.f32.gmra.mrb[0].mxu0 %v212
    %v280 = vpop.f32.mrb[0].mxu0
    %v281 = vadd.f32 %v208, %v280
    %v282 = vpop.f32.mrb[0].mxu0
    %283 = vdwg.mxu0
    %vm284 = vcmask 1043456
    %v285 = vsel %vm284, %v281, -inf
    %v286 = vrot.slane %v285, 4
    %v287 = vmax.f32 %v285, %v286
    %v288 = vrot.slane %v287, 2
    %v289 = vmax.f32 %v287, %v288
    %v290 = vrot.slane %v289, 1
    %v291 = vmax.f32 %v289, %v290
    %v292 = vsub.f32 %v281, %v291
    %v293 = vmul.f32 %v292, 1.442695
    %v294 = vpow.pop %v293
    %v295 = vsel %vm284, %v294, 0.0
    %v296 = vrot.slane %v295, 4
    %v297 = vadd.f32 %v295, %v296
    %v298 = vrot.slane %v297, 2
    %v299 = vadd.f32 %v297, %v298
    %v300 = vrot.slane %v299, 1
    %v301 = vadd.f32 %v299, %v300
    %v302 = vld [vmem:[%s5] sm:$0x1]
    %v303 = vmul.f32 %v302, %v301
    %v304 = vadd.f32 %v294, 0.0
    %vm305 = vcmp.lt.f32.partialorder %v304, %v303
    %v306 = vsel %vm305, 1, 0
    %v308 = vrot.slane %v294, 1
    %v310 = vadd.f32 %v304, %v308
    %vm311 = vcmp.lt.f32.partialorder %v310, %v303
    %v312 = vsel %vm311, 1, 0
    %v313 = vadd.s32 %v306, %v312
    %v314 = vrot.slane %v294, 2
    %v316 = vadd.f32 %v310, %v314
    %vm317 = vcmp.lt.f32.partialorder %v316, %v303
    %v318 = vsel %vm317, 1, 0
    %v319 = vadd.s32 %v313, %v318
    %v320 = vrot.slane %v294, 3
    %v322 = vadd.f32 %v316, %v320
    %vm323 = vcmp.lt.f32.partialorder %v322, %v303
    %v324 = vsel %vm323, 1, 0
    %v325 = vadd.s32 %v319, %v324
    %vm326 = vcmp.lt.s32.totalorder %v325, 3
    %v327 = vsel %vm326, %v325, 3
    %v328 = vlaneseq
    %v329 = vshrl.u32 %v328, 7
    %v330 = vlaneseq
    %v331 = vshrl.u32 %v330, 7
    %v332 = vsub.s32 0, %v331
    %v333 = vrot.slane %v327, %v332
    %vm334 = vcmp.eq.s32.totalorder %v329, %v333
    %v335 = vsel %vm334, 1, 0
    %v336 = vcvt.s32.f32 %v335
    %v337 = vmul.f32 %v336, %v281
    %v338 = vsel %vm284, %v337, 0.0
    %v339 = vrot.slane %v338, 4
    %v340 = vadd.f32 %v338, %v339
    %v341 = vrot.slane %v340, 2
    %v342 = vadd.f32 %v340, %v341
    %v343 = vrot.slane %v342, 1
    %v344 = vadd.f32 %v342, %v343
    %v345 = vlog2.pop %v301
    %v346 = vmul.f32 %v345, 0.6931472
    %v347 = vadd.f32 %v291, %v346
    %v348 = vsub.f32 %v344, %v347
    %v349 = vcvt.s32.f32 %v327
    %v351 = vrot.slane %v349, 7
    %vm353 = vcmask 1040384
    %v354 = vsel %vm353, %v348, %v351
    %355 = vst [vmem:[#allocation2] sm:$0x3] %v354
    // Predicated region
    $region26: #{tpu_custom_call.1} parent=1 // pred_check
      _
    $region27: #{tpu_custom_call.1} parent=1 // pred_check_branch
      %357 = sbr.rel (0) target = $region29
    $region28: #{tpu_custom_call.1} parent=1 // pred_region
      %s359 = ssub.s32 32, 32
      %360 = vsyncadd [#allocation3], %s359
      %s362 = sshll.u32 [#allocation2], 4
      %s363 = int_to_ptr.vmem [resolvable:$true] %s362
      %365 = dma.vmem_to_hbm [thread:$0]  %s363, 32, %s6, [#allocation3]
    $region29: #{tpu_custom_call.1} parent=1 // pred_fallthru
      _
    // Predicated region
    $region30: #{tpu_custom_call.1} parent=1 // pred_check
      _
    $region31: #{tpu_custom_call.1} parent=1 // pred_check_branch
      %367 = sbr.rel (0) target = $region33
    $region32: #{tpu_custom_call.1} parent=1 // pred_region
      %368 = dma.done [#allocation3], 32
    $region33: #{tpu_custom_call.1} parent=1 // pred_fallthru
      _
    %369 = vsyncpa [#allocation3], 1

</llo_original>
